<compile_context>
chip_gen: v7x
topology: tpu7x:2x2x1
jax: 0.10.0
libtpu: 0.0.40
codegen_flags: <defaults>
</compile_context>

<pallas_src>
import functools

import jax
import jax.numpy as jnp
from jax.experimental import pallas as pl
from jax.experimental.pallas import tpu as pltpu


def _pick_tile_hw(HW, C, itemsize, max_tile=None):
    """Largest lane-tile (multiple of 128) whose double-buffered inputs fit ~16 MiB VMEM."""
    # dtype-aware sublane padding of the logits tile: (8,128) f32 / (16,128) bf16 / (32,128) i8
    sublane = {4: 8, 2: 16, 1: 32}.get(itemsize, 8)
    c_pad = -(-C // sublane) * sublane
    # per lane-column bytes, double-buffered: logits tile + int32 targets (padded to 8 sublanes)
    bytes_per_col = 2 * (c_pad * itemsize + 8 * 4)
    tile = (16 << 20) // bytes_per_col
    tile = max(128, (tile // 128) * 128)
    tile = min(tile, 1 << 17)                    # generous cap; amortizes ~0.35us/step overhead
    if max_tile is not None:
        tile = min(tile, max(128, (max_tile // 128) * 128))
    hw_ceil = -(-HW // 128) * 128
    return min(tile, hw_ceil)


def _make_kernel(HW, TILE_HW, half_blocks, need_mask):
    def kernel(x_ref, t_ref, tps_ref, sump_ref, cnt_ref, xoh_ref, lse_ref):
        h = pl.program_id(2)

        @pl.when(h == 0)
        def _init():
            tps_ref[...] = jnp.zeros_like(tps_ref)
            sump_ref[...] = jnp.zeros_like(sump_ref)
            cnt_ref[...] = jnp.zeros_like(cnt_ref)
            xoh_ref[...] = jnp.zeros_like(xoh_ref)
            lse_ref[...] = jnp.zeros_like(lse_ref)

        x = x_ref[0].astype(jnp.float32)   # (C, T): classes on sublanes, pixels on lanes
        t = t_ref[0]                       # (1, T): int32 class indices

        class_ids = jax.lax.broadcasted_iota(jnp.int32, x.shape, dimension=0)  # (C, T)
        oh = class_ids == t                                                     # (C, T) bool

        if need_mask:
            abs_blk = pl.program_id(0) * half_blocks + h          # un-clamped tile position
            lane = jax.lax.broadcasted_iota(jnp.int32, t.shape, dimension=1)    # (1, T)
            valid = (abs_blk * TILE_HW + lane) < HW                             # (1, T) bool
            x = jnp.where(valid, x, 0.0)     # also neutralizes garbage in padded lanes
            oh = jnp.logical_and(oh, valid)

        # numerically-stable softmax along the class (sublane) axis
        m = jnp.max(x, axis=0, keepdims=True)      # (1, T)  sublane reduce (XLU)
        e = jnp.exp(x - m)                         # (C, T)  EUP
        s = jnp.sum(e, axis=0, keepdims=True)      # (1, T)  sublane reduce (XLU)
        p = e * pl.reciprocal(s, approx=True)      # EUP slot; approx=False for bitwise parity

        # per-class lane sums: VPU tree-adds + one small cross-lane reduce each (no one-hot mul)
        tps_c = jnp.sum(jnp.where(oh, p, 0.0), axis=1, keepdims=True)    # (C, 1) sum p*onehot
        cnt_c = jnp.sum(jnp.where(oh, 1.0, 0.0), axis=1, keepdims=True)  # (C, 1) pixel count
        xoh_c = jnp.sum(jnp.where(oh, x, 0.0), axis=1, keepdims=True)    # (C, 1) sum x at target

        # CE uses -log softmax(x)[t] = log(s) + m - x_t  (no extra sublane reduce in-kernel)
        lse_row = jnp.log(s) + m                   # (1, T)
        p_for_sum = p
        if need_mask:
            lse_row = jnp.where(valid, lse_row, 0.0)
            p_for_sum = jnp.where(valid, p, 0.0)   # partial-tile fix: padded lanes give p = 1/C
        sump_c = jnp.sum(p_for_sum, axis=1, keepdims=True)               # (C, 1) sum p
        lse_c = jnp.sum(lse_row, axis=1, keepdims=True)                  # (1, 1)

        # accumulate per-(split, batch) statistics (outputs stay VMEM-resident across hw axis)
        tps_ref[...] += tps_c[None, None]
        sump_ref[...] += sump_c[None, None]
        cnt_ref[...] += cnt_c[None, None]
        xoh_ref[...] += xoh_c[None, None]
        lse_ref[...] += lse_c[None, None]

    return kernel


def _run_kernel(x, t, max_tile=None):
    # x: (N, C, HW) logits (any float dtype), t: (N, 1, HW) int32
    N, C, HW = x.shape
    TILE = _pick_tile_hw(HW, C, x.dtype.itemsize, max_tile)
    grid_hw = -(-HW // TILE)

    # Leading size-2 parallel axis so both v7x TensorCores get work when the batch axis alone
    # cannot be split evenly (N odd, notably N == 1).  Each half accumulates its own partial
    # statistics; the wrapper sums the halves.
    split = 2 if (N % 2 == 1 and grid_hw >= 2) else 1
    half_blocks = -(-grid_hw // split)
    needs_clamp = split * half_blocks != grid_hw
    need_mask = (HW % TILE != 0) or needs_clamp

    if needs_clamp:
        def blk(s, h):  # last half may step past the end: clamp the DMA, mask in-kernel
            return jnp.minimum(s * half_blocks + h, grid_hw - 1)
    else:
        def blk(s, h):
            return s * half_blocks + h

    kernel = _make_kernel(HW, TILE, half_blocks, need_mask)

    stat_shape = jax.ShapeDtypeStruct((split, N, C, 1), jnp.float32)
    out_shapes = (
        stat_shape,                                           # tps   = sum(p * onehot)
        stat_shape,                                           # sum(p)      -> fps = sum(p) - tps
        stat_shape,                                           # pixel count -> fns = count - tps
        stat_shape,                                           # sum(x * onehot)  (CE part)
        jax.ShapeDtypeStruct((split, N, 1, 1), jnp.float32),  # sum(log s + m)   (CE part)
    )
    stat_spec = pl.BlockSpec((1, 1, C, 1), lambda s, b, h: (s, b, 0, 0))
    lse_spec = pl.BlockSpec((1, 1, 1, 1), lambda s, b, h: (s, b, 0, 0))

    return pl.pallas_call(
        kernel,
        out_shape=out_shapes,
        grid_spec=pltpu.PrefetchScalarGridSpec(
            num_scalar_prefetch=0,
            grid=(split, N, half_blocks),
            in_specs=[
                pl.BlockSpec((1, C, TILE), lambda s, b, h: (b, 0, blk(s, h))),
                pl.BlockSpec((1, 1, TILE), lambda s, b, h: (b, 0, blk(s, h))),
            ],
            out_specs=(stat_spec, stat_spec, stat_spec, stat_spec, lse_spec),
        ),
        compiler_params=pltpu.CompilerParams(
            dimension_semantics=("parallel", "parallel", "arbitrary"),
            # > v5e's 16 MiB scoped default (so the big tiles fit), < v7x's 32 MiB scoped
            # default and every generation's physical VMEM -> safe on v5e/v6e/v7x.
            vmem_limit_bytes=28 << 20,
        ),
    )(x, t)


@functools.partial(jax.jit, static_argnames=("alpha", "eps", "max_tile"))
def segmentation_loss(logits_nchw, targets, *, alpha, eps=1e-5, max_tile=None):
    """logits_nchw: (N, C, H, W) float logits, targets: (N, H, W) int class indices.

    Pass bf16 logits to halve HBM traffic (main lever on v5e); the kernel computes in f32.
    """
    N, C, H, W = logits_nchw.shape
    HW = H * W
    beta = 2.0 - alpha

    # glue: pure reshapes (no transpose, no dtype change) -> (N, C, HW) and (N, 1, HW)
    x = logits_nchw.reshape(N, C, HW)
    t = targets.reshape(N, 1, HW).astype(jnp.int32)

    tps, sump, cnt, xoh, lse = _run_kernel(x, t, max_tile)

    # combine the split-axis partials -> (N, C)
    tps = tps.sum(axis=0)[..., 0]
    sump = sump.sum(axis=0)[..., 0]
    cnt = cnt.sum(axis=0)[..., 0]

    fps = (sump - tps) * alpha          # sum(p*(1-oh)) = sum(p) - tps
    fns = (cnt - tps) * beta            # sum((1-p)*oh) = count - tps

    # Tversky / Dice term (matches tversky_loss.forward)
    loss = 2.0 * tps / (2.0 * tps + fps + fns + eps)  # (N, C)
    loss = jnp.mean(loss, axis=0)                     # (C,)
    dice = 1.0 - jnp.mean(loss[1:])

    # CrossEntropyLoss (mean over all N*H*W pixels): sum(log s + m) - sum(x at target)
    ce = (jnp.sum(lse) - jnp.sum(xoh)) / (N * HW)
    return dice + ce


def _reference_loss(logits_nchw, targets, alpha, eps=1e-5):
    """Pure-JAX reference mirroring the PyTorch module, for validation."""
    N, C, H, W = logits_nchw.shape
    beta = 2.0 - alpha
    oh = jax.nn.one_hot(targets, C, axis=1, dtype=jnp.float32)      # (N, C, H, W)
    p = jax.nn.softmax(logits_nchw.astype(jnp.float32), axis=1)     # (N, C, H, W)
    dims = (2, 3)
    tps = jnp.sum(p * oh, axis=dims)
    fps = jnp.sum(p * (1.0 - oh), axis=dims) * alpha
    fns = jnp.sum((1.0 - p) * oh, axis=dims) * beta
    loss = 2.0 * tps / (2.0 * tps + fps + fns + eps)
    loss = jnp.mean(loss, axis=0)
    dice = 1.0 - jnp.mean(loss[1:])
    logp = jax.nn.log_softmax(logits_nchw.astype(jnp.float32), axis=1)
    ce = -jnp.mean(jnp.sum(logp * oh, axis=1))
    return dice + ce


if __name__ == "__main__":
    key = jax.random.PRNGKey(0)

    def check(idx, N, C, H, W, alpha, max_tile=None, tol=5e-4):
        k1, k2 = jax.random.split(jax.random.fold_in(key, idx))
        logits = jax.random.normal(k1, (N, C, H, W), dtype=jnp.float32)
        targets = jax.random.randint(k2, (N, H, W), 0, C, dtype=jnp.int32)
        out = jax.block_until_ready(
            segmentation_loss(logits, targets, alpha=alpha, max_tile=max_tile))
        ref = jax.block_until_ready(_reference_loss(logits, targets, alpha))
        # approx=True EUP reciprocal in the softmax -> slightly loose tolerance
        assert jnp.allclose(out, ref, rtol=tol, atol=tol), ((N, C, H, W), out, ref)

    # primary small case (matches the module's forward: logits (N,C,H,W), targets (N,H,W))
    check(0, 2, 4, 16, 16, alpha=0.5)
    # partial-tile path (HW = 100 is not a lane multiple) -> exercises the masked sum(p) fix
    check(1, 1, 4, 10, 10, alpha=0.7)
    # odd batch + multi-tile: leading split axis + clamped index_map (v7x dual-TC path)
    check(2, 1, 4, 16, 24, alpha=0.5, max_tile=128)

    print("KERNEL_OK")
</pallas_src>

<mosaic_0001>
module attributes {stable_mosaic.version = 11 : i64} {
  func.func @kernel(%arg0: i32, %arg1: i32, %arg2: i32, %arg3: memref<1x4x256xf32, #tpu.memory_space<vmem>>, %arg4: memref<1x1x256xi32, #tpu.memory_space<vmem>>, %arg5: memref<1x1x4x1xf32, #tpu.memory_space<vmem>>, %arg6: memref<1x1x4x1xf32, #tpu.memory_space<vmem>>, %arg7: memref<1x1x4x1xf32, #tpu.memory_space<vmem>>, %arg8: memref<1x1x4x1xf32, #tpu.memory_space<vmem>>, %arg9: memref<1x1x1x1xf32, #tpu.memory_space<vmem>>) attributes {dimension_semantics = [#tpu.dimension_semantics<parallel>, #tpu.dimension_semantics<parallel>, #tpu.dimension_semantics<arbitrary>], iteration_bounds = array<i64: 1, 2, 1>, scalar_prefetch = 0 : i64, scratch_operands = 0 : i64, tpu.core_type = #tpu.core_type<tc>, window_params = [{transform_indices = @transform_0, window_bounds = array<i64: 1, 4, 256>}, {transform_indices = @transform_1, window_bounds = array<i64: 1, 1, 256>}, {transform_indices = @transform_2, window_bounds = array<i64: 1, 1, 4, 1>}, {transform_indices = @transform_3, window_bounds = array<i64: 1, 1, 4, 1>}, {transform_indices = @transform_4, window_bounds = array<i64: 1, 1, 4, 1>}, {transform_indices = @transform_5, window_bounds = array<i64: 1, 1, 4, 1>}, {transform_indices = @transform_6, window_bounds = array<i64: 1, 1, 1, 1>}]} {
    %c0_i32 = arith.constant 0 : i32
    %0 = arith.cmpi eq, %arg2, %c0_i32 : i32
    %1 = arith.extui %0 : i1 to i32
    %c0_i32_0 = arith.constant 0 : i32
    %2 = arith.cmpi ne, %1, %c0_i32_0 : i32
    scf.if %2 {
      %cst_56 = arith.constant 0.000000e+00 : f32
      %59 = vector.broadcast %cst_56 : f32 to vector<1x1x4x1xf32>
      %c0_57 = arith.constant 0 : index
      %c0_58 = arith.constant 0 : index
      %c0_59 = arith.constant 0 : index
      %c0_60 = arith.constant 0 : index
      %60 = vector.load %arg5[%c0_57, %c0_58, %c0_59, %c0_60] : memref<1x1x4x1xf32, #tpu.memory_space<vmem>>, vector<1x1x4x1xf32>
      tpu.vector_store %arg5[%c0_57, %c0_58, %c0_59, %c0_60], %59 {strides = array<i32>} : memref<1x1x4x1xf32, #tpu.memory_space<vmem>>, vector<1x1x4x1xf32>,
      %cst_61 = arith.constant 0.000000e+00 : f32
      %61 = vector.broadcast %cst_61 : f32 to vector<1x1x4x1xf32>
      %c0_62 = arith.constant 0 : index
      %c0_63 = arith.constant 0 : index
      %c0_64 = arith.constant 0 : index
      %c0_65 = arith.constant 0 : index
      %62 = vector.load %arg6[%c0_62, %c0_63, %c0_64, %c0_65] : memref<1x1x4x1xf32, #tpu.memory_space<vmem>>, vector<1x1x4x1xf32>
      tpu.vector_store %arg6[%c0_62, %c0_63, %c0_64, %c0_65], %61 {strides = array<i32>} : memref<1x1x4x1xf32, #tpu.memory_space<vmem>>, vector<1x1x4x1xf32>,
      %cst_66 = arith.constant 0.000000e+00 : f32
      %63 = vector.broadcast %cst_66 : f32 to vector<1x1x4x1xf32>
      %c0_67 = arith.constant 0 : index
      %c0_68 = arith.constant 0 : index
      %c0_69 = arith.constant 0 : index
      %c0_70 = arith.constant 0 : index
      %64 = vector.load %arg7[%c0_67, %c0_68, %c0_69, %c0_70] : memref<1x1x4x1xf32, #tpu.memory_space<vmem>>, vector<1x1x4x1xf32>
      tpu.vector_store %arg7[%c0_67, %c0_68, %c0_69, %c0_70], %63 {strides = array<i32>} : memref<1x1x4x1xf32, #tpu.memory_space<vmem>>, vector<1x1x4x1xf32>,
      %cst_71 = arith.constant 0.000000e+00 : f32
      %65 = vector.broadcast %cst_71 : f32 to vector<1x1x4x1xf32>
      %c0_72 = arith.constant 0 : index
      %c0_73 = arith.constant 0 : index
      %c0_74 = arith.constant 0 : index
      %c0_75 = arith.constant 0 : index
      %66 = vector.load %arg8[%c0_72, %c0_73, %c0_74, %c0_75] : memref<1x1x4x1xf32, #tpu.memory_space<vmem>>, vector<1x1x4x1xf32>
      tpu.vector_store %arg8[%c0_72, %c0_73, %c0_74, %c0_75], %65 {strides = array<i32>} : memref<1x1x4x1xf32, #tpu.memory_space<vmem>>, vector<1x1x4x1xf32>,
      %cst_76 = arith.constant 0.000000e+00 : f32
      %67 = vector.broadcast %cst_76 : f32 to vector<1x1x1x1xf32>
      %c0_77 = arith.constant 0 : index
      %c0_78 = arith.constant 0 : index
      %c0_79 = arith.constant 0 : index
      %c0_80 = arith.constant 0 : index
      %68 = vector.load %arg9[%c0_77, %c0_78, %c0_79, %c0_80] : memref<1x1x1x1xf32, #tpu.memory_space<vmem>>, vector<1x1x1x1xf32>
      tpu.vector_store %arg9[%c0_77, %c0_78, %c0_79, %c0_80], %67 {strides = array<i32>} : memref<1x1x1x1xf32, #tpu.memory_space<vmem>>, vector<1x1x1x1xf32>,
    } else {
    }
    %c0 = arith.constant 0 : index
    %c0_1 = arith.constant 0 : index
    %c0_2 = arith.constant 0 : index
    %3 = vector.load %arg3[%c0, %c0_1, %c0_2] : memref<1x4x256xf32, #tpu.memory_space<vmem>>, vector<1x4x256xf32>
    %4 = vector.shape_cast %3 : vector<1x4x256xf32> to vector<4x256xf32>
    %c0_3 = arith.constant 0 : index
    %c0_4 = arith.constant 0 : index
    %c0_5 = arith.constant 0 : index
    %5 = vector.load %arg4[%c0_3, %c0_4, %c0_5] : memref<1x1x256xi32, #tpu.memory_space<vmem>>, vector<1x1x256xi32>
    %6 = vector.shape_cast %5 : vector<1x1x256xi32> to vector<1x256xi32>
    %7 = tpu.iota {dimensions = array<i32: 0>} : vector<4x256xi32>
    %8 = vector.broadcast %6 : vector<1x256xi32> to vector<4x256xi32>
    %9 = arith.cmpi eq, %7, %8 : vector<4x256xi32>
    %cst = arith.constant dense<0xFF800000> : vector<256xf32>
    %10 = vector.multi_reduction <maximumf>, %4, %cst [0] : vector<4x256xf32> to vector<256xf32>
    %11 = vector.shape_cast %10 : vector<256xf32> to vector<1x256xf32>
    %12 = vector.broadcast %11 : vector<1x256xf32> to vector<4x256xf32>
    %13 = arith.subf %4, %12 : vector<4x256xf32>
    %14 = math.exp %13 : vector<4x256xf32>
    %cst_6 = arith.constant dense<0.000000e+00> : vector<256xf32>
    %15 = vector.multi_reduction <add>, %14, %cst_6 [0] : vector<4x256xf32> to vector<256xf32>
    %16 = vector.shape_cast %15 : vector<256xf32> to vector<1x256xf32>
    %17 = tpu.reciprocal %16 {approx = true} : vector<1x256xf32> -> vector<1x256xf32>
    %18 = vector.broadcast %17 : vector<1x256xf32> to vector<4x256xf32>
    %19 = arith.mulf %14, %18 : vector<4x256xf32>
    %cst_7 = arith.constant 0.000000e+00 : f32
    %20 = vector.broadcast %cst_7 : f32 to vector<4x256xf32>
    %21 = arith.select %9, %19, %20 : vector<4x256xi1>, vector<4x256xf32>
    %cst_8 = arith.constant dense<0.000000e+00> : vector<4xf32>
    %22 = vector.multi_reduction <add>, %21, %cst_8 [1] : vector<4x256xf32> to vector<4xf32>
    %23 = vector.shape_cast %22 : vector<4xf32> to vector<4x1xf32>
    %cst_9 = arith.constant 1.000000e+00 : f32
    %cst_10 = arith.constant 0.000000e+00 : f32
    %24 = vector.broadcast %cst_9 : f32 to vector<4x256xf32>
    %25 = vector.broadcast %cst_10 : f32 to vector<4x256xf32>
    %26 = arith.select %9, %24, %25 : vector<4x256xi1>, vector<4x256xf32>
    %cst_11 = arith.constant dense<0.000000e+00> : vector<4xf32>
    %27 = vector.multi_reduction <add>, %26, %cst_11 [1] : vector<4x256xf32> to vector<4xf32>
    %28 = vector.shape_cast %27 : vector<4xf32> to vector<4x1xf32>
    %cst_12 = arith.constant 0.000000e+00 : f32
    %29 = vector.broadcast %cst_12 : f32 to vector<4x256xf32>
    %30 = arith.select %9, %4, %29 : vector<4x256xi1>, vector<4x256xf32>
    %cst_13 = arith.constant dense<0.000000e+00> : vector<4xf32>
    %31 = vector.multi_reduction <add>, %30, %cst_13 [1] : vector<4x256xf32> to vector<4xf32>
    %32 = vector.shape_cast %31 : vector<4xf32> to vector<4x1xf32>
    %33 = math.log %16 : vector<1x256xf32>
    %34 = arith.addf %33, %11 : vector<1x256xf32>
    %cst_14 = arith.constant dense<0.000000e+00> : vector<4xf32>
    %35 = vector.multi_reduction <add>, %19, %cst_14 [1] : vector<4x256xf32> to vector<4xf32>
    %36 = vector.shape_cast %35 : vector<4xf32> to vector<4x1xf32>
    %cst_15 = arith.constant dense<0.000000e+00> : vector<1xf32>
    %37 = vector.multi_reduction <add>, %34, %cst_15 [1] : vector<1x256xf32> to vector<1xf32>
    %38 = vector.shape_cast %37 : vector<1xf32> to vector<1x1xf32>
    %c0_16 = arith.constant 0 : index
    %c0_17 = arith.constant 0 : index
    %c0_18 = arith.constant 0 : index
    %c0_19 = arith.constant 0 : index
    %39 = vector.load %arg5[%c0_16, %c0_17, %c0_18, %c0_19] : memref<1x1x4x1xf32, #tpu.memory_space<vmem>>, vector<1x1x4x1xf32>
    %40 = vector.shape_cast %23 : vector<4x1xf32> to vector<1x1x4x1xf32>
    %41 = arith.addf %39, %40 : vector<1x1x4x1xf32>
    %c0_20 = arith.constant 0 : index
    %c0_21 = arith.constant 0 : index
    %c0_22 = arith.constant 0 : index
    %c0_23 = arith.constant 0 : index
    %42 = vector.load %arg5[%c0_20, %c0_21, %c0_22, %c0_23] : memref<1x1x4x1xf32, #tpu.memory_space<vmem>>, vector<1x1x4x1xf32>
    tpu.vector_store %arg5[%c0_20, %c0_21, %c0_22, %c0_23], %41 {strides = array<i32>} : memref<1x1x4x1xf32, #tpu.memory_space<vmem>>, vector<1x1x4x1xf32>,
    %c0_24 = arith.constant 0 : index
    %c0_25 = arith.constant 0 : index
    %c0_26 = arith.constant 0 : index
    %c0_27 = arith.constant 0 : index
    %43 = vector.load %arg6[%c0_24, %c0_25, %c0_26, %c0_27] : memref<1x1x4x1xf32, #tpu.memory_space<vmem>>, vector<1x1x4x1xf32>
    %44 = vector.shape_cast %36 : vector<4x1xf32> to vector<1x1x4x1xf32>
    %45 = arith.addf %43, %44 : vector<1x1x4x1xf32>
    %c0_28 = arith.constant 0 : index
    %c0_29 = arith.constant 0 : index
    %c0_30 = arith.constant 0 : index
    %c0_31 = arith.constant 0 : index
    %46 = vector.load %arg6[%c0_28, %c0_29, %c0_30, %c0_31] : memref<1x1x4x1xf32, #tpu.memory_space<vmem>>, vector<1x1x4x1xf32>
    tpu.vector_store %arg6[%c0_28, %c0_29, %c0_30, %c0_31], %45 {strides = array<i32>} : memref<1x1x4x1xf32, #tpu.memory_space<vmem>>, vector<1x1x4x1xf32>,
    %c0_32 = arith.constant 0 : index
    %c0_33 = arith.constant 0 : index
    %c0_34 = arith.constant 0 : index
    %c0_35 = arith.constant 0 : index
    %47 = vector.load %arg7[%c0_32, %c0_33, %c0_34, %c0_35] : memref<1x1x4x1xf32, #tpu.memory_space<vmem>>, vector<1x1x4x1xf32>
    %48 = vector.shape_cast %28 : vector<4x1xf32> to vector<1x1x4x1xf32>
    %49 = arith.addf %47, %48 : vector<1x1x4x1xf32>
    %c0_36 = arith.constant 0 : index
    %c0_37 = arith.constant 0 : index
    %c0_38 = arith.constant 0 : index
    %c0_39 = arith.constant 0 : index
    %50 = vector.load %arg7[%c0_36, %c0_37, %c0_38, %c0_39] : memref<1x1x4x1xf32, #tpu.memory_space<vmem>>, vector<1x1x4x1xf32>
    tpu.vector_store %arg7[%c0_36, %c0_37, %c0_38, %c0_39], %49 {strides = array<i32>} : memref<1x1x4x1xf32, #tpu.memory_space<vmem>>, vector<1x1x4x1xf32>,
    %c0_40 = arith.constant 0 : index
    %c0_41 = arith.constant 0 : index
    %c0_42 = arith.constant 0 : index
    %c0_43 = arith.constant 0 : index
    %51 = vector.load %arg8[%c0_40, %c0_41, %c0_42, %c0_43] : memref<1x1x4x1xf32, #tpu.memory_space<vmem>>, vector<1x1x4x1xf32>
    %52 = vector.shape_cast %32 : vector<4x1xf32> to vector<1x1x4x1xf32>
    %53 = arith.addf %51, %52 : vector<1x1x4x1xf32>
    %c0_44 = arith.constant 0 : index
    %c0_45 = arith.constant 0 : index
    %c0_46 = arith.constant 0 : index
    %c0_47 = arith.constant 0 : index
    %54 = vector.load %arg8[%c0_44, %c0_45, %c0_46, %c0_47] : memref<1x1x4x1xf32, #tpu.memory_space<vmem>>, vector<1x1x4x1xf32>
    tpu.vector_store %arg8[%c0_44, %c0_45, %c0_46, %c0_47], %53 {strides = array<i32>} : memref<1x1x4x1xf32, #tpu.memory_space<vmem>>, vector<1x1x4x1xf32>,
    %c0_48 = arith.constant 0 : index
    %c0_49 = arith.constant 0 : index
    %c0_50 = arith.constant 0 : index
    %c0_51 = arith.constant 0 : index
    %55 = vector.load %arg9[%c0_48, %c0_49, %c0_50, %c0_51] : memref<1x1x1x1xf32, #tpu.memory_space<vmem>>, vector<1x1x1x1xf32>
    %56 = vector.shape_cast %38 : vector<1x1xf32> to vector<1x1x1x1xf32>
    %57 = arith.addf %55, %56 : vector<1x1x1x1xf32>
    %c0_52 = arith.constant 0 : index
    %c0_53 = arith.constant 0 : index
    %c0_54 = arith.constant 0 : index
    %c0_55 = arith.constant 0 : index
    %58 = vector.load %arg9[%c0_52, %c0_53, %c0_54, %c0_55] : memref<1x1x1x1xf32, #tpu.memory_space<vmem>>, vector<1x1x1x1xf32>
    tpu.vector_store %arg9[%c0_52, %c0_53, %c0_54, %c0_55], %57 {strides = array<i32>} : memref<1x1x1x1xf32, #tpu.memory_space<vmem>>, vector<1x1x1x1xf32>,
    return
  }
  func.func @transform_0(%arg0: i32, %arg1: i32, %arg2: i32) -> (i32, i32, i32) {
    %c1_i32 = arith.constant 1 : i32
    %0 = arith.muli %arg0, %c1_i32 : i32
    %1 = arith.addi %0, %arg2 : i32
    %c0_i32 = arith.constant 0 : i32
    %c0_i32_0 = arith.constant 0 : i32
    return %arg1, %c0_i32, %1 : i32, i32, i32
  }
  func.func @transform_1(%arg0: i32, %arg1: i32, %arg2: i32) -> (i32, i32, i32) {
    %c1_i32 = arith.constant 1 : i32
    %0 = arith.muli %arg0, %c1_i32 : i32
    %1 = arith.addi %0, %arg2 : i32
    %c0_i32 = arith.constant 0 : i32
    %c0_i32_0 = arith.constant 0 : i32
    return %arg1, %c0_i32, %1 : i32, i32, i32
  }
  func.func @transform_2(%arg0: i32, %arg1: i32, %arg2: i32) -> (i32, i32, i32, i32) {
    %c0_i32 = arith.constant 0 : i32
    %c0_i32_0 = arith.constant 0 : i32
    %c0_i32_1 = arith.constant 0 : i32
    return %arg0, %arg1, %c0_i32, %c0_i32_0 : i32, i32, i32, i32
  }
  func.func @transform_3(%arg0: i32, %arg1: i32, %arg2: i32) -> (i32, i32, i32, i32) {
    %c0_i32 = arith.constant 0 : i32
    %c0_i32_0 = arith.constant 0 : i32
    %c0_i32_1 = arith.constant 0 : i32
    return %arg0, %arg1, %c0_i32, %c0_i32_0 : i32, i32, i32, i32
  }
  func.func @transform_4(%arg0: i32, %arg1: i32, %arg2: i32) -> (i32, i32, i32, i32) {
    %c0_i32 = arith.constant 0 : i32
    %c0_i32_0 = arith.constant 0 : i32
    %c0_i32_1 = arith.constant 0 : i32
    return %arg0, %arg1, %c0_i32, %c0_i32_0 : i32, i32, i32, i32
  }
  func.func @transform_5(%arg0: i32, %arg1: i32, %arg2: i32) -> (i32, i32, i32, i32) {
    %c0_i32 = arith.constant 0 : i32
    %c0_i32_0 = arith.constant 0 : i32
    %c0_i32_1 = arith.constant 0 : i32
    return %arg0, %arg1, %c0_i32, %c0_i32_0 : i32, i32, i32, i32
  }
  func.func @transform_6(%arg0: i32, %arg1: i32, %arg2: i32) -> (i32, i32, i32, i32) {
    %c0_i32 = arith.constant 0 : i32
    %c0_i32_0 = arith.constant 0 : i32
    %c0_i32_1 = arith.constant 0 : i32
    return %arg0, %arg1, %c0_i32, %c0_i32_0 : i32, i32, i32, i32
  }
}

</mosaic_0001>

<llo_original>
// kernel: segmentation_loss.1
$region0: #{segmentation_loss.1}
  #allocation0 [shape = 'u32[]', space=smem, size = 0x4, offset = 0x4, fixed_abs, tag = 'smem constant byte address 0x4 - core index']
  #allocation1 [shape = 'u32[144,128]{1,0:T(1,128)}', space=vmem, size = 0x12000, scoped, tag = 'internal scratch']
  %s0 = inlined_call_operand.vmem [shape: f32[2,4,256], index: 0, kind: input, shape index: {}]
  %s1 = inlined_call_operand.vmem [shape: s32[2,1,256], index: 1, kind: input, shape index: {}]
  %s2 = inlined_call_operand.vmem [shape: f32[1,2,4,1], index: 2, kind: output, shape index: {0}]
  %s3 = inlined_call_operand.vmem [shape: f32[1,2,4,1], index: 3, kind: output, shape index: {1}]
  %s4 = inlined_call_operand.vmem [shape: f32[1,2,4,1], index: 4, kind: output, shape index: {2}]
  %s5 = inlined_call_operand.vmem [shape: f32[1,2,4,1], index: 5, kind: output, shape index: {3}]
  %s6 = inlined_call_operand.vmem [shape: f32[1,2,1,1], index: 6, kind: output, shape index: {4}]
  %7 = xla_tuple %s2, %s3, %s4, %s5, %s6
  %s8 = sld [smem:[#allocation0]]
  $region77: #{segmentation_loss.1} parent=0
    _
  %s10 = ssub.s32 1, %s8
  %s11 = scalar_select 0, %s10, %s8
  loop: start=0, step=1, limit=4
  $region2: #{segmentation_loss.1} parent=0 // loop_pre_header
    _
  $region3: #{segmentation_loss.1} parent=0 // loop_header
    %s13 = sphi 0, %s17
    %p14 = scmp.ge.s32.totalorder %s13, 4
    %s20 = sphi 0, %s39
    %s21 = sphi 0, %s35
    %s22 = sphi 0, %s31
    %s23 = sphi 0, %s20
    %s24 = sphi 0, %s21
    %s25 = sphi 0, %s22
    %s26 = sphi 0, %s23
    %s27 = sphi 0, %s24
    %s28 = sphi 0, %s25
    %s46 = sphi 0, %s48
    %s49 = sphi 0, %s46
    %s50 = sphi 0, %s49
    %s66 = sphi 0, %s50
    %s76 = sphi 0, %s78
    %s79 = sphi 0, %s76
    %s80 = sphi 0, %s79
    %s96 = sphi 0, %s80
    %s104 = sphi 0, %s106
    %s107 = sphi 0, %s104
    %s108 = sphi 0, %s107
    %s124 = sphi 0, %s108
    %s132 = sphi 0, %s134
    %s135 = sphi 0, %s132
    %s136 = sphi 0, %s135
    %s152 = sphi 0, %s136
    %s160 = sphi 0, %s162
    %s163 = sphi 0, %s160
    %s164 = sphi 0, %s163
    %s180 = sphi 0, %s164
    %s188 = sphi 0, %s190
    %s191 = sphi 0, %s188
    %s192 = sphi 0, %s191
    %s208 = sphi 0, %s192
    %s216 = sphi 0, %s218
    %s219 = sphi 0, %s216
    %s220 = sphi 0, %s219
    %s236 = sphi 0, %s220
  $region4: #{segmentation_loss.1} parent=0 // loop_header_branch
    %16 = sbr.rel (%p14) target = $region8
  $region5: #{segmentation_loss.1} parent=0 // loop_body
    %s18 = ssub.s32 %s13, 1
    %s19 = ssub.s32 %s13, 2
    %s29 = sadd.s32 1, %s22
    %p30 = scmp.ge.s32.totalorder %s29, 1
    %s31 = scalar_select %p30, 0, %s29
    %s32 = sadd.s32 1, %s21
    %s33 = scalar_select %p30, %s32, %s21
    %p34 = scmp.ge.s32.totalorder %s33, 2
    %s35 = scalar_select %p34, 0, %s33
    %s36 = sadd.s32 1, %s20
    %s37 = scalar_select %p34, %s36, %s20
    %p38 = scmp.ge.s32.totalorder %s37, 1
    %s39 = scalar_select %p38, 0, %s37
    %s40 = sadd.s32 %s20, %s22
    %s41 = sadd.s32 %s39, %s31
    %s42 = ssub.s32 %s21, %s35
    %s43 = ssub.s32 %s40, %s41
    %s44 = sor.u32 %s42, %s43
    %p45 = scmp.eq.s32.totalorder %s44, 0
    %s47 = sadd.s32 %s46, 1
    %s48 = scalar_select %p45, %s46, %s47
    %p51 = pneg %p45
    %p52 = scmp.eq.s32.totalorder %s13, 1
    %p53 = por %p51, %p52
    %p54 = scmp.ne.s32.totalorder %s46, %s49
    %p55 = scmp.eq.s32.totalorder %s13, 0
    %p56 = por %p54, %p55
    %p57 = scmp.ne.s32.totalorder %s46, %s49
    %p58 = scmp.eq.s32.totalorder %s18, 1
    %p59 = por %p57, %p58
    %p60 = scmp.ne.s32.totalorder %s49, %s50
    %p61 = scmp.eq.s32.totalorder %s18, 0
    %p62 = por %p60, %p61
    %p63 = scmp.ne.s32.totalorder %s49, %s50
    %p64 = scmp.eq.s32.totalorder %s19, 1
    %p65 = por %p63, %p64
    %p67 = scmp.ne.s32.totalorder %s50, %s66
    %p68 = scmp.eq.s32.totalorder %s19, 0
    %p69 = por %p67, %p68
    %s70 = sadd.s32 %s20, %s22
    %s71 = sadd.s32 %s39, %s31
    %s72 = ssub.s32 %s21, %s35
    %s73 = ssub.s32 %s70, %s71
    %s74 = sor.u32 %s72, %s73
    %p75 = scmp.eq.s32.totalorder %s74, 0
    %s77 = sadd.s32 %s76, 1
    %s78 = scalar_select %p75, %s76, %s77
    %p81 = pneg %p75
    %p82 = scmp.eq.s32.totalorder %s13, 1
    %p83 = por %p81, %p82
    %p84 = scmp.ne.s32.totalorder %s76, %s79
    %p85 = scmp.eq.s32.totalorder %s13, 0
    %p86 = por %p84, %p85
    %p87 = scmp.ne.s32.totalorder %s76, %s79
    %p88 = scmp.eq.s32.totalorder %s18, 1
    %p89 = por %p87, %p88
    %p90 = scmp.ne.s32.totalorder %s79, %s80
    %p91 = scmp.eq.s32.totalorder %s18, 0
    %p92 = por %p90, %p91
    %p93 = scmp.ne.s32.totalorder %s79, %s80
    %p94 = scmp.eq.s32.totalorder %s19, 1
    %p95 = por %p93, %p94
    %p97 = scmp.ne.s32.totalorder %s80, %s96
    %p98 = scmp.eq.s32.totalorder %s19, 0
    %p99 = por %p97, %p98
    %s100 = ssub.s32 %s20, %s39
    %s101 = ssub.s32 %s21, %s35
    %s102 = sor.u32 %s100, %s101
    %p103 = scmp.eq.s32.totalorder %s102, 0
    %s105 = sadd.s32 %s104, 1
    %s106 = scalar_select %p103, %s104, %s105
    %p109 = pneg %p103
    %p110 = scmp.eq.s32.totalorder %s13, 1
    %p111 = por %p109, %p110
    %p112 = scmp.ne.s32.totalorder %s104, %s107
    %p113 = scmp.eq.s32.totalorder %s13, 0
    %p114 = por %p112, %p113
    %p115 = scmp.ne.s32.totalorder %s104, %s107
    %p116 = scmp.eq.s32.totalorder %s18, 1
    %p117 = por %p115, %p116
    %p118 = scmp.ne.s32.totalorder %s107, %s108
    %p119 = scmp.eq.s32.totalorder %s18, 0
    %p120 = por %p118, %p119
    %p121 = scmp.ne.s32.totalorder %s107, %s108
    %p122 = scmp.eq.s32.totalorder %s19, 1
    %p123 = por %p121, %p122
    %p125 = scmp.ne.s32.totalorder %s108, %s124
    %p126 = scmp.eq.s32.totalorder %s19, 0
    %p127 = por %p125, %p126
    %s128 = ssub.s32 %s20, %s39
    %s129 = ssub.s32 %s21, %s35
    %s130 = sor.u32 %s128, %s129
    %p131 = scmp.eq.s32.totalorder %s130, 0
    %s133 = sadd.s32 %s132, 1
    %s134 = scalar_select %p131, %s132, %s133
    %p137 = pneg %p131
    %p138 = scmp.eq.s32.totalorder %s13, 1
    %p139 = por %p137, %p138
    %p140 = scmp.ne.s32.totalorder %s132, %s135
    %p141 = scmp.eq.s32.totalorder %s13, 0
    %p142 = por %p140, %p141
    %p143 = scmp.ne.s32.totalorder %s132, %s135
    %p144 = scmp.eq.s32.totalorder %s18, 1
    %p145 = por %p143, %p144
    %p146 = scmp.ne.s32.totalorder %s135, %s136
    %p147 = scmp.eq.s32.totalorder %s18, 0
    %p148 = por %p146, %p147
    %p149 = scmp.ne.s32.totalorder %s135, %s136
    %p150 = scmp.eq.s32.totalorder %s19, 1
    %p151 = por %p149, %p150
    %p153 = scmp.ne.s32.totalorder %s136, %s152
    %p154 = scmp.eq.s32.totalorder %s19, 0
    %p155 = por %p153, %p154
    %s156 = ssub.s32 %s20, %s39
    %s157 = ssub.s32 %s21, %s35
    %s158 = sor.u32 %s156, %s157
    %p159 = scmp.eq.s32.totalorder %s158, 0
    %s161 = sadd.s32 %s160, 1
    %s162 = scalar_select %p159, %s160, %s161
    %p165 = pneg %p159
    %p166 = scmp.eq.s32.totalorder %s13, 1
    %p167 = por %p165, %p166
    %p168 = scmp.ne.s32.totalorder %s160, %s163
    %p169 = scmp.eq.s32.totalorder %s13, 0
    %p170 = por %p168, %p169
    %p171 = scmp.ne.s32.totalorder %s160, %s163
    %p172 = scmp.eq.s32.totalorder %s18, 1
    %p173 = por %p171, %p172
    %p174 = scmp.ne.s32.totalorder %s163, %s164
    %p175 = scmp.eq.s32.totalorder %s18, 0
    %p176 = por %p174, %p175
    %p177 = scmp.ne.s32.totalorder %s163, %s164
    %p178 = scmp.eq.s32.totalorder %s19, 1
    %p179 = por %p177, %p178
    %p181 = scmp.ne.s32.totalorder %s164, %s180
    %p182 = scmp.eq.s32.totalorder %s19, 0
    %p183 = por %p181, %p182
    %s184 = ssub.s32 %s20, %s39
    %s185 = ssub.s32 %s21, %s35
    %s186 = sor.u32 %s184, %s185
    %p187 = scmp.eq.s32.totalorder %s186, 0
    %s189 = sadd.s32 %s188, 1
    %s190 = scalar_select %p187, %s188, %s189
    %p193 = pneg %p187
    %p194 = scmp.eq.s32.totalorder %s13, 1
    %p195 = por %p193, %p194
    %p196 = scmp.ne.s32.totalorder %s188, %s191
    %p197 = scmp.eq.s32.totalorder %s13, 0
    %p198 = por %p196, %p197
    %p199 = scmp.ne.s32.totalorder %s188, %s191
    %p200 = scmp.eq.s32.totalorder %s18, 1
    %p201 = por %p199, %p200
    %p202 = scmp.ne.s32.totalorder %s191, %s192
    %p203 = scmp.eq.s32.totalorder %s18, 0
    %p204 = por %p202, %p203
    %p205 = scmp.ne.s32.totalorder %s191, %s192
    %p206 = scmp.eq.s32.totalorder %s19, 1
    %p207 = por %p205, %p206
    %p209 = scmp.ne.s32.totalorder %s192, %s208
    %p210 = scmp.eq.s32.totalorder %s19, 0
    %p211 = por %p209, %p210
    %s212 = ssub.s32 %s20, %s39
    %s213 = ssub.s32 %s21, %s35
    %s214 = sor.u32 %s212, %s213
    %p215 = scmp.eq.s32.totalorder %s214, 0
    %s217 = sadd.s32 %s216, 1
    %s218 = scalar_select %p215, %s216, %s217
    %p221 = pneg %p215
    %p222 = scmp.eq.s32.totalorder %s13, 1
    %p223 = por %p221, %p222
    %p224 = scmp.ne.s32.totalorder %s216, %s219
    %p225 = scmp.eq.s32.totalorder %s13, 0
    %p226 = por %p224, %p225
    %p227 = scmp.ne.s32.totalorder %s216, %s219
    %p228 = scmp.eq.s32.totalorder %s18, 1
    %p229 = por %p227, %p228
    %p230 = scmp.ne.s32.totalorder %s219, %s220
    %p231 = scmp.eq.s32.totalorder %s18, 0
    %p232 = por %p230, %p231
    %p233 = scmp.ne.s32.totalorder %s219, %s220
    %p234 = scmp.eq.s32.totalorder %s19, 1
    %p235 = por %p233, %p234
    %p237 = scmp.ne.s32.totalorder %s220, %s236
    %p238 = scmp.eq.s32.totalorder %s19, 0
    %p239 = por %p237, %p238
    %p240 = scmp.le.s32.totalorder 1, %s13
    %p241 = scmp.lt.s32.totalorder %s13, 3
    %p242 = pnand %p240, %p241
    %p243 = pneg %p242
    // Predicated region
    $region9: #{segmentation_loss.1} parent=5 // pred_check
      _
    $region10: #{segmentation_loss.1} parent=5 // pred_check_branch
      %245 = sbr.rel (%p242) target = $region12
    $region11: #{segmentation_loss.1} parent=5 // pred_region
      %s246 = ssub.s32 %s13, 1
    $region12: #{segmentation_loss.1} parent=5 // pred_fallthru
      _
    %p247 = scmp.lt.s32.totalorder %s13, 2
    // Predicated region
    $region13: #{segmentation_loss.1} parent=5 // pred_check
      %p248 = pneg %p247
    $region14: #{segmentation_loss.1} parent=5 // pred_check_branch
      %250 = sbr.rel (%p248) target = $region16
    $region15: #{segmentation_loss.1} parent=5 // pred_region
      // Predicated region
      $region17: #{segmentation_loss.1} parent=15 // pred_check
        %p251 = pneg %p56
      $region18: #{segmentation_loss.1} parent=15 // pred_check_branch
        %253 = sbr.rel (%p251) target = $region20
      $region19: #{segmentation_loss.1} parent=15 // pred_region
        %s254 = sadd.s32 %s20, %s22
        %s255 = smul.u32 2, %s254
        %p256 = scmp.lt.s32.totalorder %s21, 1
        %s257 = scalar_select %p256, %s21, 1
        %p258 = scmp.lt.s32.totalorder %s255, 1
        %s259 = scalar_select %p258, %s255, 1
        %s260 = smul.addr %s257, 2
        %s261 = sadd.s32 %s259, %s260
        %s262 = smul.addr %s261, 4
        %s263 = scalar_lea.vmem %s0, %s262
        %s264 = sadd.s32 %s20, %s22
        %s265 = smul.u32 2, %s264
      $region20: #{segmentation_loss.1} parent=15 // pred_fallthru
        _
      // Predicated region
      $region21: #{segmentation_loss.1} parent=15 // pred_check
        %p266 = pneg %p86
      $region22: #{segmentation_loss.1} parent=15 // pred_check_branch
        %268 = sbr.rel (%p266) target = $region24
      $region23: #{segmentation_loss.1} parent=15 // pred_region
        %s269 = sadd.s32 %s20, %s22
        %s270 = smul.u32 2, %s269
        %p271 = scmp.lt.s32.totalorder %s21, 1
        %s272 = scalar_select %p271, %s21, 1
        %p273 = scmp.lt.s32.totalorder %s270, 1
        %s274 = scalar_select %p273, %s270, 1
        %s275 = smul.addr %s272, 2
        %s276 = sadd.s32 %s274, %s275
        %s277 = scalar_lea.vmem %s1, %s276
        %s278 = sadd.s32 %s20, %s22
        %s279 = smul.u32 2, %s278
      $region24: #{segmentation_loss.1} parent=15 // pred_fallthru
        _
    $region16: #{segmentation_loss.1} parent=5 // pred_fallthru
      _
    %p280 = scmp.le.s32.totalorder 1, %s13
    %p281 = scmp.lt.s32.totalorder %s13, 3
    %p282 = pnand %p280, %p281
    %p283 = pneg %p282
    // Predicated region
    $region25: #{segmentation_loss.1} parent=5 // pred_check
      _
    $region26: #{segmentation_loss.1} parent=5 // pred_check_branch
      %285 = sbr.rel (%p282) target = $region28
    $region27: #{segmentation_loss.1} parent=5 // pred_region
      %s286 = ssub.s32 %s13, 1
      %s287 = sadd.s32 %s23, %s25
      %s288 = smul.u32 2, %s287
      %p289 = scmp.lt.s32.totalorder %s24, 1
      %s290 = scalar_select %p289, %s24, 1
      %p291 = scmp.lt.s32.totalorder %s288, 1
      %s292 = scalar_select %p291, %s288, 1
      %s293 = smul.addr %s290, 2
      %s294 = sadd.s32 %s292, %s293
      %s295 = smul.addr %s294, 4
      %s296 = scalar_lea.vmem %s0, %s295
      %p297 = pneg %p62
      %p298 = pneg %p59
      %s299 = sadd.s32 %s23, %s25
      %s300 = smul.u32 2, %s299
      %p301 = scmp.lt.s32.totalorder %s24, 1
      %s302 = scalar_select %p301, %s24, 1
      %p303 = scmp.lt.s32.totalorder %s300, 1
      %s304 = scalar_select %p303, %s300, 1
      %s305 = smul.addr %s302, 2
      %s306 = sadd.s32 %s304, %s305
      %s307 = scalar_lea.vmem %s1, %s306
      %p308 = pneg %p92
      %p309 = pneg %p89
      %p310 = pneg %p120
      %p311 = pneg %p117
      %p312 = scmp.lt.s32.totalorder %s23, 0
      %s313 = scalar_select %p312, %s23, 0
      %p314 = scmp.lt.s32.totalorder %s24, 1
      %s315 = scalar_select %p314, %s24, 1
      %s316 = smul.addr %s313, 2
      %s317 = sadd.s32 %s315, %s316
      %s318 = smul.addr %s317, 4
      %s319 = scalar_lea.vmem %s2, %s318
      %p320 = pneg %p148
      %p321 = pneg %p145
      %p322 = scmp.lt.s32.totalorder %s23, 0
      %s323 = scalar_select %p322, %s23, 0
      %p324 = scmp.lt.s32.totalorder %s24, 1
      %s325 = scalar_select %p324, %s24, 1
      %s326 = smul.addr %s323, 2
      %s327 = sadd.s32 %s325, %s326
      %s328 = smul.addr %s327, 4
      %s329 = scalar_lea.vmem %s3, %s328
      %p330 = pneg %p176
      %p331 = pneg %p173
      %p332 = scmp.lt.s32.totalorder %s23, 0
      %s333 = scalar_select %p332, %s23, 0
      %p334 = scmp.lt.s32.totalorder %s24, 1
      %s335 = scalar_select %p334, %s24, 1
      %s336 = smul.addr %s333, 2
      %s337 = sadd.s32 %s335, %s336
      %s338 = smul.addr %s337, 4
      %s339 = scalar_lea.vmem %s4, %s338
      %p340 = pneg %p204
      %p341 = pneg %p201
      %p342 = scmp.lt.s32.totalorder %s23, 0
      %s343 = scalar_select %p342, %s23, 0
      %p344 = scmp.lt.s32.totalorder %s24, 1
      %s345 = scalar_select %p344, %s24, 1
      %s346 = smul.addr %s343, 2
      %s347 = sadd.s32 %s345, %s346
      %s348 = smul.addr %s347, 4
      %s349 = scalar_lea.vmem %s5, %s348
      %p350 = pneg %p232
      %p351 = pneg %p229
      %p352 = scmp.lt.s32.totalorder %s23, 0
      %s353 = scalar_select %p352, %s23, 0
      %p354 = scmp.lt.s32.totalorder %s24, 1
      %s355 = scalar_select %p354, %s24, 1
      %s356 = smul.addr %s353, 2
      %s357 = sadd.s32 %s355, %s356
      %s358 = scalar_lea.vmem %s6, %s357
      %s359 = sadd.s32 %s23, %s25
      %s360 = smul.u32 2, %s359
      %p361 = scmp.lt.s32.totalorder %s24, 1
      %s362 = scalar_select %p361, %s24, 1
      %p363 = scmp.lt.s32.totalorder %s360, 1
      %s364 = scalar_select %p363, %s360, 1
      %s365 = smul.addr %s362, 2
      %s366 = sadd.s32 %s364, %s365
      %s367 = smul.addr %s366, 4
      %s368 = scalar_lea.vmem %s0, %s367
      %s369 = sadd.s32 %s23, %s25
      %s370 = smul.u32 2, %s369
      %s371 = sadd.s32 %s23, %s25
      %s372 = smul.u32 2, %s371
      %p373 = scmp.lt.s32.totalorder %s24, 1
      %s374 = scalar_select %p373, %s24, 1
      %p375 = scmp.lt.s32.totalorder %s372, 1
      %s376 = scalar_select %p375, %s372, 1
      %s377 = smul.addr %s374, 2
      %s378 = sadd.s32 %s376, %s377
      %s379 = scalar_lea.vmem %s1, %s378
      %s380 = sadd.s32 %s23, %s25
      %s381 = smul.u32 2, %s380
      %p382 = scmp.lt.s32.totalorder %s23, 0
      %s383 = scalar_select %p382, %s23, 0
      %p384 = scmp.lt.s32.totalorder %s24, 1
      %s385 = scalar_select %p384, %s24, 1
      %s386 = smul.addr %s383, 2
      %s387 = sadd.s32 %s385, %s386
      %s388 = smul.addr %s387, 4
      %s389 = scalar_lea.vmem %s2, %s388
      %p390 = scmp.lt.s32.totalorder %s23, 0
      %s391 = scalar_select %p390, %s23, 0
      %p392 = scmp.lt.s32.totalorder %s24, 1
      %s393 = scalar_select %p392, %s24, 1
      %s394 = smul.addr %s391, 2
      %s395 = sadd.s32 %s393, %s394
      %s396 = smul.addr %s395, 4
      %s397 = scalar_lea.vmem %s3, %s396
      %p398 = scmp.lt.s32.totalorder %s23, 0
      %s399 = scalar_select %p398, %s23, 0
      %p400 = scmp.lt.s32.totalorder %s24, 1
      %s401 = scalar_select %p400, %s24, 1
      %s402 = smul.addr %s399, 2
      %s403 = sadd.s32 %s401, %s402
      %s404 = smul.addr %s403, 4
      %s405 = scalar_lea.vmem %s4, %s404
      %p406 = scmp.lt.s32.totalorder %s23, 0
      %s407 = scalar_select %p406, %s23, 0
      %p408 = scmp.lt.s32.totalorder %s24, 1
      %s409 = scalar_select %p408, %s24, 1
      %s410 = smul.addr %s407, 2
      %s411 = sadd.s32 %s409, %s410
      %s412 = smul.addr %s411, 4
      %s413 = scalar_lea.vmem %s5, %s412
      %p414 = scmp.lt.s32.totalorder %s23, 0
      %s415 = scalar_select %p414, %s23, 0
      %p416 = scmp.lt.s32.totalorder %s24, 1
      %s417 = scalar_select %p416, %s24, 1
      %s418 = smul.addr %s415, 2
      %s419 = sadd.s32 %s417, %s418
      %s420 = scalar_lea.vmem %s6, %s419
      %p421 = scmp.eq.s32.totalorder %s25, 0
      // Predicated region
      $region29: #{segmentation_loss.1} parent=27 // pred_check
        %p422 = pneg %p421
      $region30: #{segmentation_loss.1} parent=27 // pred_check_branch
        %424 = sbr.rel (%p422) target = $region32
      $region31: #{segmentation_loss.1} parent=27 // pred_region
        %vm425 = vcmask 3072
        %426 = vst.msk [vmem:[%s389] sm:$0xf] %vm425, 0.0
        %427 = vst.msk [vmem:[%s397] sm:$0xf] %vm425, 0.0
        %428 = vst.msk [vmem:[%s405] sm:$0xf] %vm425, 0.0
        %429 = vst.msk [vmem:[%s413] sm:$0xf] %vm425, 0.0
        %vm430 = vcmask 0
        %431 = vst.msk [vmem:[%s420] sm:$0x1] %vm430, 0.0
      $region32: #{segmentation_loss.1} parent=27 // pred_fallthru
        _
      %v432 = vld [vmem:[%s368] sm:$0xff]
      %v433 = vld [vmem:[%s379] sm:$0x3]
      %v434 = vlaneseq
      %v435 = vshrl.u32 %v434, 7
      %v436 = vlaneseq
      %v437 = vshrl.u32 %v436, 7
      %v438 = vsub.s32 0, %v437
      %v439 = vrot.slane %v433, %v438
      %v440 = vlaneseq
      %v441 = vshrl.u32 %v440, 7
      %v442 = vsub.s32 1, %v441
      %v443 = vrot.slane %v433, %v442
      %vm444 = vcmp.eq.s32.totalorder %v435, %v439
      %vm445 = vcmp.eq.s32.totalorder %v435, %v443
      %v447 = vcombine.high %v432, %v432
      %vm449 = vcmask 1043456
      %v450 = vsel %vm449, %v432, -inf
      %v451 = vrot.slane %v450, 4
      %v452 = vmax.f32 %v450, %v451
      %v453 = vrot.slane %v452, 2
      %v454 = vmax.f32 %v452, %v453
      %v455 = vrot.slane %v454, 1
      %v456 = vmax.f32 %v454, %v455
      %v457 = vsel %vm449, %v447, -inf
      %v458 = vrot.slane %v457, 4
      %v459 = vmax.f32 %v457, %v458
      %v460 = vrot.slane %v459, 2
      %v461 = vmax.f32 %v459, %v460
      %v462 = vrot.slane %v461, 1
      %v463 = vmax.f32 %v461, %v462
      %v466 = vcombine.low %v456, %v463
      %v468 = vsub.f32 %v432, %v466
      %v469 = vmul.f32 %v468, 1.442695
      %v470 = vpow.pop %v469
      %v472 = vcombine.high %v470, %v470
      %v474 = vsel %vm449, %v470, 0.0
      %v475 = vrot.slane %v474, 4
      %v476 = vadd.f32 %v474, %v475
      %v477 = vrot.slane %v476, 2
      %v478 = vadd.f32 %v476, %v477
      %v479 = vrot.slane %v478, 1
      %v480 = vadd.f32 %v478, %v479
      %v481 = vsel %vm449, %v472, 0.0
      %v482 = vrot.slane %v481, 4
      %v483 = vadd.f32 %v481, %v482
      %v484 = vrot.slane %v483, 2
      %v485 = vadd.f32 %v483, %v484
      %v486 = vrot.slane %v485, 1
      %v487 = vadd.f32 %v485, %v486
      %v488 = vrcp.pop %v480
      %v489 = vrcp.pop %v487
      %v492 = vcombine.low %v488, %v489
      %v494 = vmul.f32 %v470, %v492
      %v496 = vcombine.high %v494, %v494
      %v498 = vsel %vm444, %v494, 0.0
      %v499 = vsel %vm445, %v496, 0.0
      %v500 = vsel %vm449, %v498, 0.0
      %v501 = vsel %vm449, %v499, 0.0
      %v502 = vadd.f32 %v500, %v501
      %503 = vadd.xlane.f32.xlu0 %v502
      %v504 = vpop.xlane.xlu0 %503
      %v505 = vsel %vm444, 1.0, 0.0
      %v506 = vsel %vm445, 1.0, 0.0
      %v507 = vsel %vm449, %v505, 0.0
      %v508 = vsel %vm449, %v506, 0.0
      %v509 = vadd.f32 %v507, %v508
      %510 = vadd.xlane.f32.xlu0 %v509
      %v511 = vpop.xlane.xlu0 %510
      %v512 = vsel %vm444, %v432, 0.0
      %v513 = vsel %vm445, %v447, 0.0
      %v514 = vsel %vm449, %v512, 0.0
      %v515 = vsel %vm449, %v513, 0.0
      %v516 = vadd.f32 %v514, %v515
      %517 = vadd.xlane.f32.xlu0 %v516
      %v518 = vpop.xlane.xlu0 %517
      %v519 = vlog2.pop %v480
      %v520 = vmul.f32 %v519, 0.6931472
      %v521 = vlog2.pop %v487
      %v522 = vmul.f32 %v521, 0.6931472
      %v523 = vadd.f32 %v520, %v456
      %v524 = vadd.f32 %v522, %v463
      %v525 = vsel %vm449, %v494, 0.0
      %v526 = vsel %vm449, %v496, 0.0
      %v527 = vadd.f32 %v525, %v526
      %528 = vadd.xlane.f32.xlu0 %v527
      %v529 = vpop.xlane.xlu0 %528
      %v530 = vadd.f32 %v523, %v524
      %531 = vadd.xlane.f32.xlu0 %v530
      %v532 = vpop.xlane.xlu0 %531
      %v533 = vld [vmem:[%s389] sm:$0xf]
      %v534 = vadd.f32 %v533, %v504
      %vm535 = vcmask 3072
      %536 = vst.msk [vmem:[%s389] sm:$0xf] %vm535, %v534
      %v537 = vld [vmem:[%s397] sm:$0xf]
      %v538 = vadd.f32 %v537, %v529
      %539 = vst.msk [vmem:[%s397] sm:$0xf] %vm535, %v538
      %v540 = vld [vmem:[%s405] sm:$0xf]
      %v541 = vadd.f32 %v540, %v511
      %542 = vst.msk [vmem:[%s405] sm:$0xf] %vm535, %v541
      %v543 = vld [vmem:[%s413] sm:$0xf]
      %v544 = vadd.f32 %v543, %v518
      %545 = vst.msk [vmem:[%s413] sm:$0xf] %vm535, %v544
      %v546 = vld [vmem:[%s420] sm:$0x1]
      %v547 = vadd.f32 %v546, %v532
      %vm548 = vcmask 0
      %549 = vst.msk [vmem:[%s420] sm:$0x1] %vm548, %v547
      %p550 = scmp.lt.s32.totalorder %s23, 0
      %s551 = scalar_select %p550, %s23, 0
      %p552 = scmp.lt.s32.totalorder %s24, 1
      %s553 = scalar_select %p552, %s24, 1
      %s554 = smul.addr %s551, 2
      %s555 = sadd.s32 %s553, %s554
      %s556 = smul.addr %s555, 4
      %s557 = scalar_lea.vmem %s2, %s556
      %p558 = scmp.lt.s32.totalorder %s23, 0
      %s559 = scalar_select %p558, %s23, 0
      %p560 = scmp.lt.s32.totalorder %s24, 1
      %s561 = scalar_select %p560, %s24, 1
      %s562 = smul.addr %s559, 2
      %s563 = sadd.s32 %s561, %s562
      %s564 = smul.addr %s563, 4
      %s565 = scalar_lea.vmem %s3, %s564
      %p566 = scmp.lt.s32.totalorder %s23, 0
      %s567 = scalar_select %p566, %s23, 0
      %p568 = scmp.lt.s32.totalorder %s24, 1
      %s569 = scalar_select %p568, %s24, 1
      %s570 = smul.addr %s567, 2
      %s571 = sadd.s32 %s569, %s570
      %s572 = smul.addr %s571, 4
      %s573 = scalar_lea.vmem %s4, %s572
      %p574 = scmp.lt.s32.totalorder %s23, 0
      %s575 = scalar_select %p574, %s23, 0
      %p576 = scmp.lt.s32.totalorder %s24, 1
      %s577 = scalar_select %p576, %s24, 1
      %s578 = smul.addr %s575, 2
      %s579 = sadd.s32 %s577, %s578
      %s580 = smul.addr %s579, 4
      %s581 = scalar_lea.vmem %s5, %s580
      %p582 = scmp.lt.s32.totalorder %s23, 0
      %s583 = scalar_select %p582, %s23, 0
      %p584 = scmp.lt.s32.totalorder %s24, 1
      %s585 = scalar_select %p584, %s24, 1
      %s586 = smul.addr %s583, 2
      %s587 = sadd.s32 %s585, %s586
      %s588 = scalar_lea.vmem %s6, %s587
      // Predicated region
      $region33: #{segmentation_loss.1} parent=27 // pred_check
        %p589 = pneg %p117
      $region34: #{segmentation_loss.1} parent=27 // pred_check_branch
        %591 = sbr.rel (%p589) target = $region36
      $region35: #{segmentation_loss.1} parent=27 // pred_region
        _
      $region36: #{segmentation_loss.1} parent=27 // pred_fallthru
        _
      // Predicated region
      $region37: #{segmentation_loss.1} parent=27 // pred_check
        %p592 = pneg %p145
      $region38: #{segmentation_loss.1} parent=27 // pred_check_branch
        %594 = sbr.rel (%p592) target = $region40
      $region39: #{segmentation_loss.1} parent=27 // pred_region
        _
      $region40: #{segmentation_loss.1} parent=27 // pred_fallthru
        _
      // Predicated region
      $region41: #{segmentation_loss.1} parent=27 // pred_check
        %p595 = pneg %p173
      $region42: #{segmentation_loss.1} parent=27 // pred_check_branch
        %597 = sbr.rel (%p595) target = $region44
      $region43: #{segmentation_loss.1} parent=27 // pred_region
        _
      $region44: #{segmentation_loss.1} parent=27 // pred_fallthru
        _
      // Predicated region
      $region45: #{segmentation_loss.1} parent=27 // pred_check
        %p598 = pneg %p201
      $region46: #{segmentation_loss.1} parent=27 // pred_check_branch
        %600 = sbr.rel (%p598) target = $region48
      $region47: #{segmentation_loss.1} parent=27 // pred_region
        _
      $region48: #{segmentation_loss.1} parent=27 // pred_fallthru
        _
      // Predicated region
      $region49: #{segmentation_loss.1} parent=27 // pred_check
        %p601 = pneg %p229
      $region50: #{segmentation_loss.1} parent=27 // pred_check_branch
        %603 = sbr.rel (%p601) target = $region52
      $region51: #{segmentation_loss.1} parent=27 // pred_region
        _
      $region52: #{segmentation_loss.1} parent=27 // pred_fallthru
        _
    $region28: #{segmentation_loss.1} parent=5 // pred_fallthru
      _
    %p604 = scmp.le.s32.totalorder 2, %s13
    // Predicated region
    $region53: #{segmentation_loss.1} parent=5 // pred_check
      %p605 = pneg %p604
    $region54: #{segmentation_loss.1} parent=5 // pred_check_branch
      %607 = sbr.rel (%p605) target = $region56
    $region55: #{segmentation_loss.1} parent=5 // pred_region
      %s608 = ssub.s32 %s13, 2
      // Predicated region
      $region57: #{segmentation_loss.1} parent=55 // pred_check
        %p609 = pneg %p123
      $region58: #{segmentation_loss.1} parent=55 // pred_check_branch
        %611 = sbr.rel (%p609) target = $region60
      $region59: #{segmentation_loss.1} parent=55 // pred_region
        %p612 = scmp.lt.s32.totalorder %s26, 0
        %s613 = scalar_select %p612, %s26, 0
        %p614 = scmp.lt.s32.totalorder %s27, 1
        %s615 = scalar_select %p614, %s27, 1
        %s616 = smul.addr %s613, 2
        %s617 = sadd.s32 %s615, %s616
        %s618 = smul.addr %s617, 4
        %s619 = scalar_lea.vmem %s2, %s618
      $region60: #{segmentation_loss.1} parent=55 // pred_fallthru
        _
      // Predicated region
      $region61: #{segmentation_loss.1} parent=55 // pred_check
        %p620 = pneg %p151
      $region62: #{segmentation_loss.1} parent=55 // pred_check_branch
        %622 = sbr.rel (%p620) target = $region64
      $region63: #{segmentation_loss.1} parent=55 // pred_region
        %p623 = scmp.lt.s32.totalorder %s26, 0
        %s624 = scalar_select %p623, %s26, 0
        %p625 = scmp.lt.s32.totalorder %s27, 1
        %s626 = scalar_select %p625, %s27, 1
        %s627 = smul.addr %s624, 2
        %s628 = sadd.s32 %s626, %s627
        %s629 = smul.addr %s628, 4
        %s630 = scalar_lea.vmem %s3, %s629
      $region64: #{segmentation_loss.1} parent=55 // pred_fallthru
        _
      // Predicated region
      $region65: #{segmentation_loss.1} parent=55 // pred_check
        %p631 = pneg %p179
      $region66: #{segmentation_loss.1} parent=55 // pred_check_branch
        %633 = sbr.rel (%p631) target = $region68
      $region67: #{segmentation_loss.1} parent=55 // pred_region
        %p634 = scmp.lt.s32.totalorder %s26, 0
        %s635 = scalar_select %p634, %s26, 0
        %p636 = scmp.lt.s32.totalorder %s27, 1
        %s637 = scalar_select %p636, %s27, 1
        %s638 = smul.addr %s635, 2
        %s639 = sadd.s32 %s637, %s638
        %s640 = smul.addr %s639, 4
        %s641 = scalar_lea.vmem %s4, %s640
      $region68: #{segmentation_loss.1} parent=55 // pred_fallthru
        _
      // Predicated region
      $region69: #{segmentation_loss.1} parent=55 // pred_check
        %p642 = pneg %p207
      $region70: #{segmentation_loss.1} parent=55 // pred_check_branch
        %644 = sbr.rel (%p642) target = $region72
      $region71: #{segmentation_loss.1} parent=55 // pred_region
        %p645 = scmp.lt.s32.totalorder %s26, 0
        %s646 = scalar_select %p645, %s26, 0
        %p647 = scmp.lt.s32.totalorder %s27, 1
        %s648 = scalar_select %p647, %s27, 1
        %s649 = smul.addr %s646, 2
        %s650 = sadd.s32 %s648, %s649
        %s651 = smul.addr %s650, 4
        %s652 = scalar_lea.vmem %s5, %s651
      $region72: #{segmentation_loss.1} parent=55 // pred_fallthru
        _
      // Predicated region
      $region73: #{segmentation_loss.1} parent=55 // pred_check
        %p653 = pneg %p235
      $region74: #{segmentation_loss.1} parent=55 // pred_check_branch
        %655 = sbr.rel (%p653) target = $region76
      $region75: #{segmentation_loss.1} parent=55 // pred_region
        %p656 = scmp.lt.s32.totalorder %s26, 0
        %s657 = scalar_select %p656, %s26, 0
        %p658 = scmp.lt.s32.totalorder %s27, 1
        %s659 = scalar_select %p658, %s27, 1
        %s660 = smul.addr %s657, 2
        %s661 = sadd.s32 %s659, %s660
        %s662 = scalar_lea.vmem %s6, %s661
      $region76: #{segmentation_loss.1} parent=55 // pred_fallthru
        _
    $region56: #{segmentation_loss.1} parent=5 // pred_fallthru
      _
  $region6: #{segmentation_loss.1} parent=0 // loop_footer
    %s17 = sadd.s32 1, %s13
  $region7: #{segmentation_loss.1} parent=0 // loop_footer_branch
    %12 = sbr.rel target = $region3
  $region8: #{segmentation_loss.1} parent=0 // loop_exit
    _

</llo_original>
